<compile_context>
chip_gen: v6e
topology: v6e:2x2x1
jax: 0.10.0
libtpu: 0.0.40
codegen_flags: <defaults>
</compile_context>

<pallas_src>
import functools
from typing import NamedTuple

import jax
import jax.numpy as jnp
from jax.experimental import pallas as pl
from jax.experimental.pallas import tpu as pltpu


_LANE = 128
_SUBLANE_BF16 = 16                     # bf16 packs 16 sublanes per vreg
_VMEM_DATA_BUDGET = 48 << 20           # conservative across v5e/v6e/v7x (v7x: 64 MiB)
_WEIGHT_RESIDENCY_BUDGET = 40 << 20    # above this, full-weight residency is dropped
_SINGLE_BUFFER_WEIGHTS_MIN = 2 << 20   # single-buffer resident weights past this size
_XLA_FAST_PATH_FLOPS = 1 << 20         # tiny problems: plain XLA fusion is faster


def _round_up(v, m):
    return (v + m - 1) // m * m


class PreparedParams(NamedTuple):
    """Zero-padded (lane-dense) parameters, padded/cast ONCE at init time."""
    w1: jax.Array   # (d_in_p, h_p)   bf16
    b1: jax.Array   # (1, h_p)        f32
    w2: jax.Array   # (h_p, d_out_p)  bf16
    b2: jax.Array   # (1, d_out_p)    f32


def prepare_params(w1, b1, w2, b2):
    """Pad feature dims to multiples of 128 and cast weights to bf16 (done once).

    Zero padding is mathematically transparent: zero weight rows/cols and zero bias
    entries contribute nothing, and padded output columns are sliced off. The padded
    buffers must stay zero-initialized (keep jnp.zeros here).
    """
    d_in, h = w1.shape
    d_out = w2.shape[1]
    d_in_p, h_p, d_out_p = (_round_up(d, _LANE) for d in (d_in, h, d_out))
    bf16, f32 = jnp.bfloat16, jnp.float32
    w1_p = jnp.zeros((d_in_p, h_p), bf16).at[:d_in, :h].set(w1.astype(bf16))
    b1_p = jnp.zeros((1, h_p), f32).at[0, :h].set(b1.astype(f32))
    w2_p = jnp.zeros((h_p, d_out_p), bf16).at[:h, :d_out].set(w2.astype(bf16))
    b2_p = jnp.zeros((1, d_out_p), f32).at[0, :d_out].set(b2.astype(f32))
    return PreparedParams(w1_p, b1_p, w2_p, b2_p)


def _mlp_kernel(x_ref, w1_ref, b1_ref, w2_ref, b2_ref, o_ref):
    # fc1: bf16 x bf16 on the MXU, f32 accumulate; bias + ReLU in f32 on the VPU.
    x = x_ref[...].astype(jnp.bfloat16)   # no-op when x was pre-padded to bf16
    h = jnp.dot(x, w1_ref[...], preferred_element_type=jnp.float32)
    h = jnp.maximum(h + b1_ref[...], 0.0)          # b1 is (1, h_p), broadcasts over rows
    # fc2: re-feed the MXU in bf16 (intentional), accumulate in f32.
    out = jnp.dot(h.astype(jnp.bfloat16), w2_ref[...],
                  preferred_element_type=jnp.float32)
    o_ref[...] = (out + b2_ref[...]).astype(o_ref.dtype)


def _xla_forward(x, p: PreparedParams, out_dim):
    """Plain XLA fallback (tiny shapes / weights too large for VMEM residency)."""
    d_in = x.shape[-1]
    h = jnp.maximum(
        jnp.dot(x.astype(jnp.bfloat16), p.w1[:d_in],
                preferred_element_type=jnp.float32) + p.b1[0], 0.0)
    out = jnp.dot(h.astype(jnp.bfloat16), p.w2,
                  preferred_element_type=jnp.float32) + p.b2[0]
    return out[:, :out_dim].astype(x.dtype)


def _choose_batch_tile(batch, d_in_p, h_p, d_out_p, weight_vmem_bytes, max_tm):
    """Balanced batch tiles: multiple of 16 rows, >=2 tiles when batch allows (v7x has
    2 TensorCores), shrink the tile before giving up weight residency."""
    n_tiles = max(pl.cdiv(batch, max_tm), 1)
    if batch >= 4 * _SUBLANE_BF16:
        n_tiles = max(n_tiles, 2)
    if batch >= 2048:
        n_tiles = max(n_tiles, 4)
    tm = _round_up(pl.cdiv(batch, n_tiles), _SUBLANE_BF16)

    # Per-tile VMEM: double-buffered x (worst case f32) + double-buffered f32 out
    # + f32 hidden intermediate.
    def tile_bytes(t):
        return 2 * t * d_in_p * 4 + 2 * t * d_out_p * 4 + t * h_p * 4

    budget = _VMEM_DATA_BUDGET - weight_vmem_bytes
    while tm > _SUBLANE_BF16 and tile_bytes(tm) > budget:
        tm = max(_SUBLANE_BF16, _round_up(tm // 2, _SUBLANE_BF16))

    # Re-balance so padding stays below one tile's worth of rows.
    n_tiles = pl.cdiv(batch, tm)
    tm = _round_up(pl.cdiv(batch, n_tiles), _SUBLANE_BF16)
    return tm, n_tiles, tile_bytes(tm)


@functools.partial(jax.jit, static_argnames=("out_dim", "max_tm", "force_pallas"))
def reconstruction_model_forward(x, params: PreparedParams, *, out_dim,
                                 max_tm=512, force_pallas=False):
    """Forward pass of fc1 -> ReLU -> fc2 on pre-padded params from prepare_params().

    x: [B, D_in] float32. Returns [B, out_dim] in x.dtype.
    """
    batch, d_in = x.shape
    d_in_p, h_p = params.w1.shape
    d_out_p = params.w2.shape[1]
    assert d_in <= d_in_p and out_dim <= d_out_p

    flops = 2 * batch * (d_in_p * h_p + h_p * d_out_p)
    weight_bytes = ((params.w1.size + params.w2.size) * 2
                    + (params.b1.size + params.b2.size) * 4)

    # Tiny problems: pallas_call launch + padding overhead dominates; plain XLA wins.
    if not force_pallas and (batch < _SUBLANE_BF16 or flops < _XLA_FAST_PATH_FLOPS):
        return _xla_forward(x, params, out_dim)

    # Weights too big for full VMEM residency on the smallest target (v7x: 64 MiB).
    # TODO(synk): add a K-tiled path (reduction grid axis marked "arbitrary" + f32
    # VMEM accumulator with pl.when init/finalize) instead of falling back to XLA.
    if weight_bytes > _WEIGHT_RESIDENCY_BUDGET:
        return _xla_forward(x, params, out_dim)

    # Resident weights: constant index_maps -> DMA'd once. Single-buffer them when
    # they are large enough for the default second pipeline buffer to matter.
    single_buffer = weight_bytes >= _SINGLE_BUFFER_WEIGHTS_MIN
    weight_vmem = weight_bytes if single_buffer else 2 * weight_bytes

    tm, n_tiles, tile_vmem = _choose_batch_tile(
        batch, d_in_p, h_p, d_out_p, weight_vmem, max_tm)
    b_p = n_tiles * tm

    # x: skip the padding pass entirely when already aligned (kernel casts per tile).
    if b_p == batch and d_in_p == d_in:
        x_in = x
    else:
        x_in = (jnp.zeros((b_p, d_in_p), jnp.bfloat16)
                .at[:batch, :d_in].set(x.astype(jnp.bfloat16)))

    def resident_spec(shape):
        if single_buffer:
            return pl.BlockSpec(shape, lambda i: (0,) * len(shape),
                                pipeline_mode=pl.Buffered(1))
        return pl.BlockSpec(shape, lambda i: (0,) * len(shape))

    # Explicit VMEM budget: above v5e's 16 MiB default scoped limit, <= v7x's 64 MiB.
    vmem_limit = int(min(64 << 20, max(32 << 20, weight_vmem + tile_vmem + (8 << 20))))

    cost = pl.CostEstimate(
        flops=int(flops),
        transcendentals=0,
        bytes_accessed=int(x_in.size * jnp.dtype(x_in.dtype).itemsize
                           + weight_bytes + b_p * d_out_p * 4),
    )

    out_p = pl.pallas_call(
        _mlp_kernel,
        out_shape=jax.ShapeDtypeStruct((b_p, d_out_p), x.dtype),
        grid=(n_tiles,),
        in_specs=[
            pl.BlockSpec((tm, d_in_p), lambda i: (i, 0)),    # x: streamed per batch tile
            resident_spec((d_in_p, h_p)),                    # W1: resident in VMEM
            resident_spec((1, h_p)),                         # b1: resident
            resident_spec((h_p, d_out_p)),                   # W2: resident
            resident_spec((1, d_out_p)),                     # b2: resident
        ],
        out_specs=pl.BlockSpec((tm, d_out_p), lambda i: (i, 0)),
        compiler_params=pltpu.CompilerParams(
            dimension_semantics=("parallel",),   # batch tiles shard across TCs on v7x
            vmem_limit_bytes=vmem_limit,
        ),
        cost_estimate=cost,
    )(x_in, params.w1, params.b1, params.w2, params.b2)

    if b_p == batch and d_out_p == out_dim:
        return out_p
    return out_p[:batch, :out_dim]


def init_params(key, input_dim, hidden_dim, output_dim, dtype=jnp.float32):
    """Deterministic init mimicking nn.Linear's default U(-1/sqrt(fan_in), ...)."""
    k1, k2, k3, k4 = jax.random.split(key, 4)
    bound1 = 1.0 / jnp.sqrt(input_dim)
    bound2 = 1.0 / jnp.sqrt(hidden_dim)
    # torch Linear weight is (out, in); we store transposed (in, out) for the kernel.
    w1 = jax.random.uniform(k1, (input_dim, hidden_dim), dtype, -bound1, bound1)
    b1 = jax.random.uniform(k2, (hidden_dim,), dtype, -bound1, bound1)
    w2 = jax.random.uniform(k3, (hidden_dim, output_dim), dtype, -bound2, bound2)
    b2 = jax.random.uniform(k4, (output_dim,), dtype, -bound2, bound2)
    return w1, b1, w2, b2


if __name__ == "__main__":
    def run_case(case_key, batch, d_in, hidden, d_out, **kw):
        kx, kp = jax.random.split(case_key)
        x = jax.random.normal(kx, (batch, d_in), jnp.float32)
        w1, b1, w2, b2 = init_params(kp, d_in, hidden, d_out)
        params = prepare_params(w1, b1, w2, b2)          # pad/cast once, outside forward
        out = reconstruction_model_forward(x, params, out_dim=d_out, **kw)
        out = jax.block_until_ready(out)
        # Pure-JAX f32 reference; kernel runs bf16 MXU matmuls with f32 accumulation,
        # so tolerances are relaxed accordingly.
        ref = jnp.maximum(x @ w1 + b1, 0.0) @ w2 + b2
        assert out.shape == (batch, d_out)
        err = float(jnp.max(jnp.abs(out - ref)))
        assert jnp.allclose(out, ref, atol=5e-2, rtol=5e-2), err

    key = jax.random.PRNGKey(0)
    k1, k2 = jax.random.split(key)
    # Lane-aligned case: no x padding / output slicing, 2 batch tiles (dual-TC on v7x).
    run_case(k1, batch=64, d_in=128, hidden=256, d_out=128)
    # The module's natural tiny shapes, forced through the Pallas path to exercise
    # zero-padding + output slicing (auto mode would take the XLA fast path here).
    run_case(k2, batch=8, d_in=16, hidden=32, d_out=16, force_pallas=True)

    print("KERNEL_OK")
</pallas_src>

<mosaic_0001>
module attributes {stable_mosaic.version = 11 : i64} {
  func.func @_mlp_kernel(%arg0: i32, %arg1: memref<32x128xf32, #tpu.memory_space<vmem>>, %arg2: memref<128x256xbf16, #tpu.memory_space<vmem>>, %arg3: memref<1x256xf32, #tpu.memory_space<vmem>>, %arg4: memref<256x128xbf16, #tpu.memory_space<vmem>>, %arg5: memref<1x128xf32, #tpu.memory_space<vmem>>, %arg6: memref<32x128xf32, #tpu.memory_space<vmem>>) attributes {dimension_semantics = [#tpu.dimension_semantics<parallel>], iteration_bounds = array<i64: 2>, scalar_prefetch = 0 : i64, scratch_operands = 0 : i64, tpu.core_type = #tpu.core_type<tc>, window_params = [{transform_indices = @transform_0, window_bounds = array<i64: 32, 128>}, {pipeline_mode = #tpu.pipeline_mode<synchronous>, transform_indices = @transform_1, window_bounds = array<i64: 128, 256>}, {pipeline_mode = #tpu.pipeline_mode<synchronous>, transform_indices = @transform_2, window_bounds = array<i64: 1, 256>}, {pipeline_mode = #tpu.pipeline_mode<synchronous>, transform_indices = @transform_3, window_bounds = array<i64: 256, 128>}, {pipeline_mode = #tpu.pipeline_mode<synchronous>, transform_indices = @transform_4, window_bounds = array<i64: 1, 128>}, {transform_indices = @transform_5, window_bounds = array<i64: 32, 128>}]} {
    %c0 = arith.constant 0 : index
    %c0_0 = arith.constant 0 : index
    %0 = vector.load %arg1[%c0, %c0_0] : memref<32x128xf32, #tpu.memory_space<vmem>>, vector<32x128xf32>
    %1 = arith.truncf %0 : vector<32x128xf32> to vector<32x128xbf16>
    %c0_1 = arith.constant 0 : index
    %c0_2 = arith.constant 0 : index
    %2 = vector.load %arg2[%c0_1, %c0_2] : memref<128x256xbf16, #tpu.memory_space<vmem>>, vector<128x256xbf16>
    %cst = arith.constant dense<0.000000e+00> : vector<32x256xf32>
    %3 = tpu.matmul %1, %2, %cst {dimension_numbers = #tpu.dot_dimension_numbers<[1], [0], [0], [1], [0, 0, 1, 1], [], []>} : vector<32x128xbf16>, vector<128x256xbf16>, vector<32x256xf32> -> vector<32x256xf32>
    %c0_3 = arith.constant 0 : index
    %c0_4 = arith.constant 0 : index
    %4 = vector.load %arg3[%c0_3, %c0_4] : memref<1x256xf32, #tpu.memory_space<vmem>>, vector<1x256xf32>
    %5 = vector.broadcast %4 : vector<1x256xf32> to vector<32x256xf32>
    %6 = arith.addf %3, %5 : vector<32x256xf32>
    %cst_5 = arith.constant 0.000000e+00 : f32
    %7 = vector.broadcast %cst_5 : f32 to vector<32x256xf32>
    %8 = arith.maximumf %6, %7 : vector<32x256xf32>
    %9 = arith.truncf %8 : vector<32x256xf32> to vector<32x256xbf16>
    %c0_6 = arith.constant 0 : index
    %c0_7 = arith.constant 0 : index
    %10 = vector.load %arg4[%c0_6, %c0_7] : memref<256x128xbf16, #tpu.memory_space<vmem>>, vector<256x128xbf16>
    %cst_8 = arith.constant dense<0.000000e+00> : vector<32x128xf32>
    %11 = tpu.matmul %9, %10, %cst_8 {dimension_numbers = #tpu.dot_dimension_numbers<[1], [0], [0], [1], [0, 0, 1, 1], [], []>} : vector<32x256xbf16>, vector<256x128xbf16>, vector<32x128xf32> -> vector<32x128xf32>
    %c0_9 = arith.constant 0 : index
    %c0_10 = arith.constant 0 : index
    %12 = vector.load %arg5[%c0_9, %c0_10] : memref<1x128xf32, #tpu.memory_space<vmem>>, vector<1x128xf32>
    %13 = vector.broadcast %12 : vector<1x128xf32> to vector<32x128xf32>
    %14 = arith.addf %11, %13 : vector<32x128xf32>
    %c0_11 = arith.constant 0 : index
    %c0_12 = arith.constant 0 : index
    %15 = vector.load %arg6[%c0_11, %c0_12] : memref<32x128xf32, #tpu.memory_space<vmem>>, vector<32x128xf32>
    tpu.vector_store %arg6[%c0_11, %c0_12], %14 {strides = array<i32>} : memref<32x128xf32, #tpu.memory_space<vmem>>, vector<32x128xf32>,
    return
  }
  func.func @transform_0(%arg0: i32) -> (i32, i32) {
    %c0_i32 = arith.constant 0 : i32
    %c0_i32_0 = arith.constant 0 : i32
    return %arg0, %c0_i32 : i32, i32
  }
  func.func @transform_1(%arg0: i32) -> (i32, i32) {
    %c0_i32 = arith.constant 0 : i32
    %c0_i32_0 = arith.constant 0 : i32
    %c0_i32_1 = arith.constant 0 : i32
    return %c0_i32, %c0_i32_0 : i32, i32
  }
  func.func @transform_2(%arg0: i32) -> (i32, i32) {
    %c0_i32 = arith.constant 0 : i32
    %c0_i32_0 = arith.constant 0 : i32
    %c0_i32_1 = arith.constant 0 : i32
    return %c0_i32, %c0_i32_0 : i32, i32
  }
  func.func @transform_3(%arg0: i32) -> (i32, i32) {
    %c0_i32 = arith.constant 0 : i32
    %c0_i32_0 = arith.constant 0 : i32
    %c0_i32_1 = arith.constant 0 : i32
    return %c0_i32, %c0_i32_0 : i32, i32
  }
  func.func @transform_4(%arg0: i32) -> (i32, i32) {
    %c0_i32 = arith.constant 0 : i32
    %c0_i32_0 = arith.constant 0 : i32
    %c0_i32_1 = arith.constant 0 : i32
    return %c0_i32, %c0_i32_0 : i32, i32
  }
  func.func @transform_5(%arg0: i32) -> (i32, i32) {
    %c0_i32 = arith.constant 0 : i32
    %c0_i32_0 = arith.constant 0 : i32
    return %arg0, %c0_i32 : i32, i32
  }
}

</mosaic_0001>

<llo_original>
// kernel: reconstruction_model_forward.1
$region0: #{reconstruction_model_forward.1}
  #allocation0 [shape = 'u32[]', space=smem, size = 0x4, offset = 0x4, fixed_abs, tag = 'smem constant byte address 0x4 - core index']
  #allocation1 [shape = 'u32[144,128]{1,0:T(1,128)}', space=vmem, size = 0x12000, scoped, tag = 'internal scratch']
  %s0 = inlined_call_operand.hbm [shape: f32[64,128], index: 0, kind: input, shape index: {}]
  %s1 = inlined_call_operand.hbm [shape: bf16[128,256], index: 1, kind: input, shape index: {}]
  %s2 = inlined_call_operand.vmem [shape: f32[1,256], index: 2, kind: input, shape index: {}]
  %s3 = inlined_call_operand.hbm [shape: bf16[256,128], index: 3, kind: input, shape index: {}]
  %s4 = inlined_call_operand.vmem [shape: f32[1,128], index: 4, kind: input, shape index: {}]
  %s5 = inlined_call_operand.hbm [shape: f32[64,128], index: 5, kind: output, shape index: {}]
  %s6 = sld [smem:[#allocation0]]
  $region65: #{reconstruction_model_forward.1} parent=0
    _
  %s8 = ssub.s32 1, %s6
  %s9 = scalar_select 0, %s8, %s6
  $region1: #{reconstruction_model_forward.1} parent=0
    #allocation2 [shape = 'u8[32768]{0}', space=vmem, size = 0x8000, scoped, tag = 'input window, operand 0']
    #allocation3 [shape = 's32[2]{0}', space=sflag, size = 0x8, scoped, tag = 'scoped memory for reconstruction_model_forward.1']
    #allocation4 [shape = 's32[2]{0}', space=sflag, size = 0x8, scoped, tag = 'scoped memory for reconstruction_model_forward.1']
    #allocation5 [shape = 'u8[65536]{0}', space=vmem, size = 0x10000, scoped, tag = 'input window, operand 1, single buffered']
    #allocation6 [shape = 's32[1]{0}', space=sflag, size = 0x4, scoped, tag = 'scoped memory for reconstruction_model_forward.1']
    #allocation7 [shape = 'u8[65536]{0}', space=vmem, size = 0x10000, scoped, tag = 'input window, operand 3, single buffered']
    #allocation8 [shape = 'u8[32768]{0}', space=vmem, size = 0x8000, scoped, tag = 'output window, operand 0']
    %10 = vsyncpa [#allocation3], 0
    %s11 = scalar_lea.sflag [#allocation3], 1
    %12 = vsyncpa %s11, 0
    %13 = vsyncpa [#allocation6], 0
    %14 = vsyncpa [#allocation4], 0
    %s15 = scalar_lea.sflag [#allocation4], 1
    %16 = vsyncpa %s15, 0
    loop: start=0, step=1, limit=4
    $region2: #{reconstruction_model_forward.1} parent=1 // loop_pre_header
      _
    $region3: #{reconstruction_model_forward.1} parent=1 // loop_header
      %s18 = sphi 0, %s22
      %p19 = scmp.ge.s32.totalorder %s18, 4
      %s28 = sphi 0, %s30
      %s31 = sphi 0, %s28
      %s32 = sphi 0, %s31
      %s48 = sphi 0, %s32
      %s52 = sphi 0, %s52
      %s54 = sphi 0, %s52
      %s55 = sphi 0, %s54
      %s69 = sphi 0, %s55
      %s73 = sphi 0, %s73
      %s75 = sphi 0, %s73
      %s76 = sphi 0, %s75
      %s90 = sphi 0, %s76
      %s94 = sphi 0, %s94
      %s96 = sphi 0, %s94
      %s97 = sphi 0, %s96
      %s111 = sphi 0, %s97
      %s115 = sphi 0, %s115
      %s117 = sphi 0, %s115
      %s118 = sphi 0, %s117
      %s132 = sphi 0, %s118
      %s138 = sphi 0, %s140
      %s141 = sphi 0, %s138
      %s142 = sphi 0, %s141
      %s158 = sphi 0, %s142
    $region4: #{reconstruction_model_forward.1} parent=1 // loop_header_branch
      %21 = sbr.rel (%p19) target = $region8
    $region5: #{reconstruction_model_forward.1} parent=1 // loop_body
      %s23 = ssub.s32 %s18, 1
      %s24 = ssub.s32 %s18, 2
      %s25 = sadd.s32 %s18, 1
      %s26 = ssub.s32 %s18, %s25
      %p27 = scmp.eq.s32.totalorder %s26, 0
      %s29 = sadd.s32 %s28, 1
      %s30 = scalar_select %p27, %s28, %s29
      %p33 = pneg %p27
      %p34 = scmp.eq.s32.totalorder %s18, 1
      %p35 = por %p33, %p34
      %p36 = scmp.ne.s32.totalorder %s28, %s31
      %p37 = scmp.eq.s32.totalorder %s18, 0
      %p38 = por %p36, %p37
      %p39 = scmp.ne.s32.totalorder %s28, %s31
      %p40 = scmp.eq.s32.totalorder %s23, 1
      %p41 = por %p39, %p40
      %p42 = scmp.ne.s32.totalorder %s31, %s32
      %p43 = scmp.eq.s32.totalorder %s23, 0
      %p44 = por %p42, %p43
      %p45 = scmp.ne.s32.totalorder %s31, %s32
      %p46 = scmp.eq.s32.totalorder %s24, 1
      %p47 = por %p45, %p46
      %p49 = scmp.ne.s32.totalorder %s32, %s48
      %p50 = scmp.eq.s32.totalorder %s24, 0
      %p51 = por %p49, %p50
      %s53 = sadd.s32 %s52, 1
      %p56 = scmp.eq.s32.totalorder %s18, 1
      %p57 = scmp.ne.s32.totalorder %s52, %s54
      %p58 = scmp.eq.s32.totalorder %s18, 0
      %p59 = por %p57, %p58
      %p60 = scmp.ne.s32.totalorder %s52, %s54
      %p61 = scmp.eq.s32.totalorder %s23, 1
      %p62 = por %p60, %p61
      %p63 = scmp.ne.s32.totalorder %s54, %s55
      %p64 = scmp.eq.s32.totalorder %s23, 0
      %p65 = por %p63, %p64
      %p66 = scmp.ne.s32.totalorder %s54, %s55
      %p67 = scmp.eq.s32.totalorder %s24, 1
      %p68 = por %p66, %p67
      %p70 = scmp.ne.s32.totalorder %s55, %s69
      %p71 = scmp.eq.s32.totalorder %s24, 0
      %p72 = por %p70, %p71
      %s74 = sadd.s32 %s73, 1
      %p77 = scmp.eq.s32.totalorder %s18, 1
      %p78 = scmp.ne.s32.totalorder %s73, %s75
      %p79 = scmp.eq.s32.totalorder %s18, 0
      %p80 = por %p78, %p79
      %p81 = scmp.ne.s32.totalorder %s73, %s75
      %p82 = scmp.eq.s32.totalorder %s23, 1
      %p83 = por %p81, %p82
      %p84 = scmp.ne.s32.totalorder %s75, %s76
      %p85 = scmp.eq.s32.totalorder %s23, 0
      %p86 = por %p84, %p85
      %p87 = scmp.ne.s32.totalorder %s75, %s76
      %p88 = scmp.eq.s32.totalorder %s24, 1
      %p89 = por %p87, %p88
      %p91 = scmp.ne.s32.totalorder %s76, %s90
      %p92 = scmp.eq.s32.totalorder %s24, 0
      %p93 = por %p91, %p92
      %s95 = sadd.s32 %s94, 1
      %p98 = scmp.eq.s32.totalorder %s18, 1
      %p99 = scmp.ne.s32.totalorder %s94, %s96
      %p100 = scmp.eq.s32.totalorder %s18, 0
      %p101 = por %p99, %p100
      %p102 = scmp.ne.s32.totalorder %s94, %s96
      %p103 = scmp.eq.s32.totalorder %s23, 1
      %p104 = por %p102, %p103
      %p105 = scmp.ne.s32.totalorder %s96, %s97
      %p106 = scmp.eq.s32.totalorder %s23, 0
      %p107 = por %p105, %p106
      %p108 = scmp.ne.s32.totalorder %s96, %s97
      %p109 = scmp.eq.s32.totalorder %s24, 1
      %p110 = por %p108, %p109
      %p112 = scmp.ne.s32.totalorder %s97, %s111
      %p113 = scmp.eq.s32.totalorder %s24, 0
      %p114 = por %p112, %p113
      %s116 = sadd.s32 %s115, 1
      %p119 = scmp.eq.s32.totalorder %s18, 1
      %p120 = scmp.ne.s32.totalorder %s115, %s117
      %p121 = scmp.eq.s32.totalorder %s18, 0
      %p122 = por %p120, %p121
      %p123 = scmp.ne.s32.totalorder %s115, %s117
      %p124 = scmp.eq.s32.totalorder %s23, 1
      %p125 = por %p123, %p124
      %p126 = scmp.ne.s32.totalorder %s117, %s118
      %p127 = scmp.eq.s32.totalorder %s23, 0
      %p128 = por %p126, %p127
      %p129 = scmp.ne.s32.totalorder %s117, %s118
      %p130 = scmp.eq.s32.totalorder %s24, 1
      %p131 = por %p129, %p130
      %p133 = scmp.ne.s32.totalorder %s118, %s132
      %p134 = scmp.eq.s32.totalorder %s24, 0
      %p135 = por %p133, %p134
      %s136 = ssub.s32 %s18, %s25
      %p137 = scmp.eq.s32.totalorder %s136, 0
      %s139 = sadd.s32 %s138, 1
      %s140 = scalar_select %p137, %s138, %s139
      %p143 = pneg %p137
      %p144 = scmp.eq.s32.totalorder %s18, 1
      %p145 = por %p143, %p144
      %p146 = scmp.ne.s32.totalorder %s138, %s141
      %p147 = scmp.eq.s32.totalorder %s18, 0
      %p148 = por %p146, %p147
      %p149 = scmp.ne.s32.totalorder %s138, %s141
      %p150 = scmp.eq.s32.totalorder %s23, 1
      %p151 = por %p149, %p150
      %p152 = scmp.ne.s32.totalorder %s141, %s142
      %p153 = scmp.eq.s32.totalorder %s23, 0
      %p154 = por %p152, %p153
      %p155 = scmp.ne.s32.totalorder %s141, %s142
      %p156 = scmp.eq.s32.totalorder %s24, 1
      %p157 = por %p155, %p156
      %p159 = scmp.ne.s32.totalorder %s142, %s158
      %p160 = scmp.eq.s32.totalorder %s24, 0
      %p161 = por %p159, %p160
      %p162 = scmp.le.s32.totalorder 1, %s18
      %p163 = scmp.lt.s32.totalorder %s18, 3
      %p164 = pnand %p162, %p163
      %p165 = pneg %p164
      // Predicated region
      $region9: #{reconstruction_model_forward.1} parent=5 // pred_check
        _
      $region10: #{reconstruction_model_forward.1} parent=5 // pred_check_branch
        %167 = sbr.rel (%p164) target = $region12
      $region11: #{reconstruction_model_forward.1} parent=5 // pred_region
        %s168 = ssub.s32 %s18, 1
        // Predicated region
        $region13: #{reconstruction_model_forward.1} parent=11 // pred_check
          %p169 = pneg %p65
        $region14: #{reconstruction_model_forward.1} parent=11 // pred_check_branch
          %171 = sbr.rel (%p169) target = $region16
        $region15: #{reconstruction_model_forward.1} parent=11 // pred_region
          %s173 = ssub.s32 2048, 2048
          %174 = vsyncadd [#allocation6], %s173
          %s175 = sshll.u32 [#allocation5], 4
          %s176 = int_to_ptr.vmem [resolvable:$true] %s175
          %181 = dma.hbm_to_vmem [thread:$0]  %s1, 2048, %s176, [#allocation6], 128, 128, 8
        $region16: #{reconstruction_model_forward.1} parent=11 // pred_fallthru
          _
        // Predicated region
        $region17: #{reconstruction_model_forward.1} parent=11 // pred_check
          %p182 = pneg %p86
        $region18: #{reconstruction_model_forward.1} parent=11 // pred_check_branch
          %184 = sbr.rel (%p182) target = $region20
        $region19: #{reconstruction_model_forward.1} parent=11 // pred_region
          _
        $region20: #{reconstruction_model_forward.1} parent=11 // pred_fallthru
          _
        // Predicated region
        $region21: #{reconstruction_model_forward.1} parent=11 // pred_check
          %p185 = pneg %p107
        $region22: #{reconstruction_model_forward.1} parent=11 // pred_check_branch
          %187 = sbr.rel (%p185) target = $region24
        $region23: #{reconstruction_model_forward.1} parent=11 // pred_region
          %s189 = ssub.s32 2048, 2048
          %190 = vsyncadd [#allocation6], %s189
          %s191 = sshll.u32 [#allocation7], 4
          %s192 = int_to_ptr.vmem [resolvable:$true] %s191
          %197 = dma.hbm_to_vmem [thread:$0]  %s3, 2048, %s192, [#allocation6], 64, 64, 4
        $region24: #{reconstruction_model_forward.1} parent=11 // pred_fallthru
          _
        // Predicated region
        $region25: #{reconstruction_model_forward.1} parent=11 // pred_check
          %p198 = pneg %p128
        $region26: #{reconstruction_model_forward.1} parent=11 // pred_check_branch
          %200 = sbr.rel (%p198) target = $region28
        $region27: #{reconstruction_model_forward.1} parent=11 // pred_region
          _
        $region28: #{reconstruction_model_forward.1} parent=11 // pred_fallthru
          _
      $region12: #{reconstruction_model_forward.1} parent=5 // pred_fallthru
        _
      %p201 = scmp.lt.s32.totalorder %s18, 2
      // Predicated region
      $region29: #{reconstruction_model_forward.1} parent=5 // pred_check
        %p202 = pneg %p201
      $region30: #{reconstruction_model_forward.1} parent=5 // pred_check_branch
        %204 = sbr.rel (%p202) target = $region32
      $region31: #{reconstruction_model_forward.1} parent=5 // pred_region
        // Predicated region
        $region33: #{reconstruction_model_forward.1} parent=31 // pred_check
          %p205 = pneg %p38
        $region34: #{reconstruction_model_forward.1} parent=31 // pred_check_branch
          %207 = sbr.rel (%p205) target = $region36
        $region35: #{reconstruction_model_forward.1} parent=31 // pred_region
          %s208 = sand.u32 %s28, 1
          %s209 = scalar_lea.sflag [#allocation3], %s208
          %s210 = sand.u32 %s28, 1
          %s211 = smul.addr %s210, 32
          %s212 = scalar_lea.vmem [#allocation2], %s211
          %s213 = smul.u32 4, %s18
          %s215 = ssub.s32 512, 512
          %216 = vsyncadd %s209, %s215
          %s217 = smul.addr %s213, 128
          %s218 = scalar_lea.hbm %s0, %s217
          %s219 = sshll.u32 %s212, 4
          %s220 = int_to_ptr.vmem [resolvable:$true] %s219
          %225 = dma.hbm_to_vmem [thread:$0]  %s218, 512, %s220, %s209, 128, 128, 8
        $region36: #{reconstruction_model_forward.1} parent=31 // pred_fallthru
          _
      $region32: #{reconstruction_model_forward.1} parent=5 // pred_fallthru
        _
      %p226 = scmp.le.s32.totalorder 1, %s18
      %p227 = scmp.lt.s32.totalorder %s18, 3
      %p228 = pnand %p226, %p227
      %p229 = pneg %p228
      // Predicated region
      $region37: #{reconstruction_model_forward.1} parent=5 // pred_check
        _
      $region38: #{reconstruction_model_forward.1} parent=5 // pred_check_branch
        %231 = sbr.rel (%p228) target = $region40
      $region39: #{reconstruction_model_forward.1} parent=5 // pred_region
        %s232 = ssub.s32 %s18, 1
        %s233 = sand.u32 %s31, 1
        %s234 = scalar_lea.sflag [#allocation3], %s233
        %s235 = sand.u32 %s31, 1
        %s236 = smul.addr %s235, 32
        %s237 = scalar_lea.vmem [#allocation2], %s236
        // Predicated region
        $region41: #{reconstruction_model_forward.1} parent=39 // pred_check
          %p238 = pneg %p44
        $region42: #{reconstruction_model_forward.1} parent=39 // pred_check_branch
          %240 = sbr.rel (%p238) target = $region44
        $region43: #{reconstruction_model_forward.1} parent=39 // pred_region
          %241 = dma.done %s234, 512
        $region44: #{reconstruction_model_forward.1} parent=39 // pred_fallthru
          _
        // Predicated region
        $region45: #{reconstruction_model_forward.1} parent=39 // pred_check
          %p242 = pneg %p65
        $region46: #{reconstruction_model_forward.1} parent=39 // pred_check_branch
          %244 = sbr.rel (%p242) target = $region48
        $region47: #{reconstruction_model_forward.1} parent=39 // pred_region
          %245 = dma.done [#allocation6], 2048
        $region48: #{reconstruction_model_forward.1} parent=39 // pred_fallthru
          _
        // Predicated region
        $region49: #{reconstruction_model_forward.1} parent=39 // pred_check
          %p246 = pneg %p107
        $region50: #{reconstruction_model_forward.1} parent=39 // pred_check_branch
          %248 = sbr.rel (%p246) target = $region52
        $region51: #{reconstruction_model_forward.1} parent=39 // pred_region
          %249 = dma.done [#allocation6], 2048
        $region52: #{reconstruction_model_forward.1} parent=39 // pred_fallthru
          _
        %s250 = sand.u32 %s31, 1
        %s251 = scalar_lea.sflag [#allocation3], %s250
        %s252 = sand.u32 %s31, 1
        %s253 = smul.addr %s252, 32
        %s254 = scalar_lea.vmem [#allocation2], %s253
        %p255 = pneg %p44
        %p256 = pneg %p41
        %p257 = pneg %p65
        %p258 = pneg %p62
        %p259 = pneg %p86
        %p260 = pneg %p83
        %p261 = pneg %p107
        %p262 = pneg %p104
        %p263 = pneg %p128
        %p264 = pneg %p125
        %p265 = pneg %p154
        %p266 = pneg %p151
        %s267 = sand.u32 %s141, 1
        %s268 = scalar_lea.sflag [#allocation4], %s267
        %s269 = sand.u32 %s141, 1
        %s270 = smul.addr %s269, 32
        %s271 = scalar_lea.vmem [#allocation8], %s270
        %s272 = smul.u32 4, %s23
        %s273 = smul.u32 4, %s23
        %v275 = vld [vmem:[%s237] sm:$0xff]
        %v276 = vld [vmem:[%s237 + $0x8] sm:$0xff]
        %v277 = vld [vmem:[%s237 + $0x10] sm:$0xff]
        %v278 = vld [vmem:[%s237 + $0x18] sm:$0xff]
        %v279 = vpack.c.bf16 %v276, %v275
        %v280 = vpack.c.bf16 %v278, %v277
        %v281 = vld [vmem:[#allocation5] sm:$0xff]
        %v282 = vld [vmem:[#allocation5 + $0x8] sm:$0xff]
        %v283 = vld [vmem:[#allocation5 + $0x10] sm:$0xff]
        %v284 = vld [vmem:[#allocation5 + $0x18] sm:$0xff]
        %v285 = vld [vmem:[#allocation5 + $0x20] sm:$0xff]
        %v286 = vld [vmem:[#allocation5 + $0x28] sm:$0xff]
        %v287 = vld [vmem:[#allocation5 + $0x30] sm:$0xff]
        %v288 = vld [vmem:[#allocation5 + $0x38] sm:$0xff]
        %v289 = vld [vmem:[#allocation5 + $0x40] sm:$0xff]
        %v290 = vld [vmem:[#allocation5 + $0x48] sm:$0xff]
        %v291 = vld [vmem:[#allocation5 + $0x50] sm:$0xff]
        %v292 = vld [vmem:[#allocation5 + $0x58] sm:$0xff]
        %v293 = vld [vmem:[#allocation5 + $0x60] sm:$0xff]
        %v294 = vld [vmem:[#allocation5 + $0x68] sm:$0xff]
        %v295 = vld [vmem:[#allocation5 + $0x70] sm:$0xff]
        %v296 = vld [vmem:[#allocation5 + $0x78] sm:$0xff]
        %v297 = vld [vmem:[%s2] sm:$0x3]
        %v299 = vlaneseq
        %v300 = vshrl.u32 %v299, 7
        %v301 = vsub.s32 0, %v300
        %v302 = vrot.slane %v297, %v301
        %v303 = vlaneseq
        %v304 = vshrl.u32 %v303, 7
        %v305 = vsub.s32 1, %v304
        %v306 = vrot.slane %v297, %v305
        %v325 = vunpack.c.l.b16 %v281
        %v326 = vunpack.c.h.b16 %v281
        %v327 = vunpack.c.l.b16 %v282
        %v328 = vunpack.c.h.b16 %v282
        %v329 = vunpack.c.l.b16 %v283
        %v330 = vunpack.c.h.b16 %v283
        %v331 = vunpack.c.l.b16 %v284
        %v332 = vunpack.c.h.b16 %v284
        %v333 = vunpack.c.l.b16 %v285
        %v334 = vunpack.c.h.b16 %v285
        %v335 = vunpack.c.l.b16 %v286
        %v336 = vunpack.c.h.b16 %v286
        %v337 = vunpack.c.l.b16 %v287
        %v338 = vunpack.c.h.b16 %v287
        %v339 = vunpack.c.l.b16 %v288
        %v340 = vunpack.c.h.b16 %v288
        %v341 = vunpack.c.l.b16 %v289
        %v342 = vunpack.c.h.b16 %v289
        %v343 = vunpack.c.l.b16 %v290
        %v344 = vunpack.c.h.b16 %v290
        %v345 = vunpack.c.l.b16 %v291
        %v346 = vunpack.c.h.b16 %v291
        %v347 = vunpack.c.l.b16 %v292
        %v348 = vunpack.c.h.b16 %v292
        %v349 = vunpack.c.l.b16 %v293
        %v350 = vunpack.c.h.b16 %v293
        %v351 = vunpack.c.l.b16 %v294
        %v352 = vunpack.c.h.b16 %v294
        %v353 = vunpack.c.l.b16 %v295
        %v354 = vunpack.c.h.b16 %v295
        %v355 = vunpack.c.l.b16 %v296
        %v356 = vunpack.c.h.b16 %v296
        %v357 = vpack.c.b16 %v327, %v325
        %v358 = vpack.c.b16 %v328, %v326
        %v359 = vpack.c.b16 %v331, %v329
        %v360 = vpack.c.b16 %v332, %v330
        %v361 = vpack.c.b16 %v335, %v333
        %v362 = vpack.c.b16 %v336, %v334
        %v363 = vpack.c.b16 %v339, %v337
        %v364 = vpack.c.b16 %v340, %v338
        %v365 = vpack.c.b16 %v343, %v341
        %v366 = vpack.c.b16 %v344, %v342
        %v367 = vpack.c.b16 %v347, %v345
        %v368 = vpack.c.b16 %v348, %v346
        %v369 = vpack.c.b16 %v351, %v349
        %v370 = vpack.c.b16 %v352, %v350
        %v371 = vpack.c.b16 %v355, %v353
        %v372 = vpack.c.b16 %v356, %v354
        %389 = vmatprep.subr.bf16.mxu0 %v372
        %390 = vmatpush1.bf16.msra.mxu0 %v371
        %391 = vmatprep.subr.bf16.mxu0 %v370
        %392 = vmatpush1.bf16.msra.mxu0 %v369
        %393 = vmatprep.subr.bf16.mxu0 %v368
        %394 = vmatpush1.bf16.msra.mxu0 %v367
        %395 = vmatprep.subr.bf16.mxu0 %v366
        %396 = vmatpush1.bf16.msra.mxu0 %v365
        %397 = vmatprep.subr.bf16.mxu0 %v364
        %398 = vmatpush1.bf16.msra.mxu0 %v363
        %399 = vmatprep.subr.bf16.mxu0 %v362
        %400 = vmatpush1.bf16.msra.mxu0 %v361
        %401 = vmatprep.subr.bf16.mxu0 %v360
        %402 = vmatpush1.bf16.msra.mxu0 %v359
        %403 = vmatprep.subr.bf16.mxu0 %v358
        %404 = vmatpush1.bf16.msra.mxu0 %v357
        %405 = vmatprep.subr.bf16.mxu0 0
        %406 = vmatpush2.bf16.msra.mxu0 0
        %407 = vmatprep.subr.bf16.mxu0 0
        %408 = vmatpush2.bf16.msra.mxu0 0
        %409 = vmatprep.subr.bf16.mxu0 0
        %410 = vmatpush2.bf16.msra.mxu0 0
        %411 = vmatprep.subr.bf16.mxu0 0
        %412 = vmatpush2.bf16.msra.mxu0 0
        %413 = vmatprep.subr.bf16.mxu0 0
        %414 = vmatpush2.bf16.msra.mxu0 0
        %415 = vmatprep.subr.bf16.mxu0 0
        %416 = vmatpush2.bf16.msra.mxu0 0
        %417 = vmatprep.subr.bf16.mxu0 0
        %418 = vmatpush2.bf16.msra.mxu0 0
        %419 = vmatprep.subr.bf16.mxu0 0
        %420 = vmatpush2.bf16.msra.mxu0 0
        %421 = vmatprep.mubr.bf16.mxu0 0
        %422 = vmatmul.mubr.bf16.gmra.mxu0 %v279
        %v423 = vpop.f32.mrf.mxu0
        %v424 = vadd.f32 %v302, %v423
        %v425 = vpop.f32.mrf.mxu0
        %v426 = vadd.f32 %v306, %v425
        %v427 = vpop.f32.mrf.mxu0
        %v428 = vadd.f32 %v302, %v427
        %v429 = vpop.f32.mrf.mxu0
        %v430 = vadd.f32 %v306, %v429
        %431 = vmatprep.mubr.bf16.mxu0 0
        %432 = vmatmul.mubr.bf16.gmra.mxu0 %v280
        %v433 = vpop.f32.mrf.mxu0
        %v434 = vadd.f32 %v302, %v433
        %v435 = vpop.f32.mrf.mxu0
        %v436 = vadd.f32 %v306, %v435
        %v437 = vpop.f32.mrf.mxu0
        %v438 = vadd.f32 %v302, %v437
        %v439 = vpop.f32.mrf.mxu0
        %v440 = vadd.f32 %v306, %v439
        %441 = vdwg.mxu0
        %v442 = vmax.f32 %v424, 0.0
        %v443 = vmax.f32 %v426, 0.0
        %v444 = vmax.f32 %v428, 0.0
        %v445 = vmax.f32 %v430, 0.0
        %v446 = vmax.f32 %v434, 0.0
        %v447 = vmax.f32 %v436, 0.0
        %v448 = vmax.f32 %v438, 0.0
        %v449 = vmax.f32 %v440, 0.0
        %v450 = vpack.c.bf16 %v444, %v442
        %v451 = vpack.c.bf16 %v445, %v443
        %v452 = vpack.c.bf16 %v448, %v446
        %v453 = vpack.c.bf16 %v449, %v447
        %v454 = vld [vmem:[#allocation7] sm:$0xf]
        %v455 = vld [vmem:[#allocation7 + $0x4] sm:$0xf]
        %v456 = vld [vmem:[#allocation7 + $0x8] sm:$0xf]
        %v457 = vld [vmem:[#allocation7 + $0xc] sm:$0xf]
        %v458 = vld [vmem:[#allocation7 + $0x10] sm:$0xf]
        %v459 = vld [vmem:[#allocation7 + $0x14] sm:$0xf]
        %v460 = vld [vmem:[#allocation7 + $0x18] sm:$0xf]
        %v461 = vld [vmem:[#allocation7 + $0x1c] sm:$0xf]
        %v462 = vld [vmem:[#allocation7 + $0x20] sm:$0xf]
        %v463 = vld [vmem:[#allocation7 + $0x24] sm:$0xf]
        %v464 = vld [vmem:[#allocation7 + $0x28] sm:$0xf]
        %v465 = vld [vmem:[#allocation7 + $0x2c] sm:$0xf]
        %v466 = vld [vmem:[#allocation7 + $0x30] sm:$0xf]
        %v467 = vld [vmem:[#allocation7 + $0x34] sm:$0xf]
        %v468 = vld [vmem:[#allocation7 + $0x38] sm:$0xf]
        %v469 = vld [vmem:[#allocation7 + $0x3c] sm:$0xf]
        %v470 = vld [vmem:[#allocation7 + $0x40] sm:$0xf]
        %v471 = vld [vmem:[#allocation7 + $0x44] sm:$0xf]
        %v472 = vld [vmem:[#allocation7 + $0x48] sm:$0xf]
        %v473 = vld [vmem:[#allocation7 + $0x4c] sm:$0xf]
        %v474 = vld [vmem:[#allocation7 + $0x50] sm:$0xf]
        %v475 = vld [vmem:[#allocation7 + $0x54] sm:$0xf]
        %v476 = vld [vmem:[#allocation7 + $0x58] sm:$0xf]
        %v477 = vld [vmem:[#allocation7 + $0x5c] sm:$0xf]
        %v478 = vld [vmem:[#allocation7 + $0x60] sm:$0xf]
        %v479 = vld [vmem:[#allocation7 + $0x64] sm:$0xf]
        %v480 = vld [vmem:[#allocation7 + $0x68] sm:$0xf]
        %v481 = vld [vmem:[#allocation7 + $0x6c] sm:$0xf]
        %v482 = vld [vmem:[#allocation7 + $0x70] sm:$0xf]
        %v483 = vld [vmem:[#allocation7 + $0x74] sm:$0xf]
        %v484 = vld [vmem:[#allocation7 + $0x78] sm:$0xf]
        %v485 = vld [vmem:[#allocation7 + $0x7c] sm:$0xf]
        %v486 = vld [vmem:[%s4] sm:$0x1]
        %v488 = vlaneseq
        %v489 = vshrl.u32 %v488, 7
        %v490 = vsub.s32 0, %v489
        %v491 = vrot.slane %v486, %v490
        %v525 = vunpack.c.l.b16 %v454
        %v526 = vunpack.c.l.b16 %v455
        %v527 = vunpack.c.l.b16 %v456
        %v528 = vunpack.c.l.b16 %v457
        %v529 = vunpack.c.l.b16 %v458
        %v530 = vunpack.c.l.b16 %v459
        %v531 = vunpack.c.l.b16 %v460
        %v532 = vunpack.c.l.b16 %v461
        %v533 = vunpack.c.l.b16 %v462
        %v534 = vunpack.c.l.b16 %v463
        %v535 = vunpack.c.l.b16 %v464
        %v536 = vunpack.c.l.b16 %v465
        %v537 = vunpack.c.l.b16 %v466
        %v538 = vunpack.c.l.b16 %v467
        %v539 = vunpack.c.l.b16 %v468
        %v540 = vunpack.c.l.b16 %v469
        %v541 = vunpack.c.l.b16 %v470
        %v542 = vunpack.c.l.b16 %v471
        %v543 = vunpack.c.l.b16 %v472
        %v544 = vunpack.c.l.b16 %v473
        %v545 = vunpack.c.l.b16 %v474
        %v546 = vunpack.c.l.b16 %v475
        %v547 = vunpack.c.l.b16 %v476
        %v548 = vunpack.c.l.b16 %v477
        %v549 = vunpack.c.l.b16 %v478
        %v550 = vunpack.c.l.b16 %v479
        %v551 = vunpack.c.l.b16 %v480
        %v552 = vunpack.c.l.b16 %v481
        %v553 = vunpack.c.l.b16 %v482
        %v554 = vunpack.c.l.b16 %v483
        %v555 = vunpack.c.l.b16 %v484
        %v556 = vunpack.c.l.b16 %v485
        %v557 = vpack.c.b16 %v526, %v525
        %v558 = vpack.c.b16 %v528, %v527
        %v559 = vpack.c.b16 %v530, %v529
        %v560 = vpack.c.b16 %v532, %v531
        %v561 = vpack.c.b16 %v534, %v533
        %v562 = vpack.c.b16 %v536, %v535
        %v563 = vpack.c.b16 %v538, %v537
        %v564 = vpack.c.b16 %v540, %v539
        %v565 = vpack.c.b16 %v542, %v541
        %v566 = vpack.c.b16 %v544, %v543
        %v567 = vpack.c.b16 %v546, %v545
        %v568 = vpack.c.b16 %v548, %v547
        %v569 = vpack.c.b16 %v550, %v549
        %v570 = vpack.c.b16 %v552, %v551
        %v571 = vpack.c.b16 %v554, %v553
        %v572 = vpack.c.b16 %v556, %v555
        %589 = vmatprep.subr.bf16.mxu0 0
        %590 = vmatpush1.bf16.msra.mxu0 %v564
        %591 = vmatprep.subr.bf16.mxu0 0
        %592 = vmatpush1.bf16.msra.mxu0 %v563
        %593 = vmatprep.subr.bf16.mxu0 0
        %594 = vmatpush1.bf16.msra.mxu0 %v562
        %595 = vmatprep.subr.bf16.mxu0 0
        %596 = vmatpush1.bf16.msra.mxu0 %v561
        %597 = vmatprep.subr.bf16.mxu0 0
        %598 = vmatpush1.bf16.msra.mxu0 %v560
        %599 = vmatprep.subr.bf16.mxu0 0
        %600 = vmatpush1.bf16.msra.mxu0 %v559
        %601 = vmatprep.subr.bf16.mxu0 0
        %602 = vmatpush1.bf16.msra.mxu0 %v558
        %603 = vmatprep.subr.bf16.mxu0 0
        %604 = vmatpush1.bf16.msra.mxu0 %v557
        %605 = vmatprep.subr.bf16.mxu0 0
        %606 = vmatpush2.bf16.msra.mxu0 %v572
        %607 = vmatprep.subr.bf16.mxu0 0
        %608 = vmatpush2.bf16.msra.mxu0 %v571
        %609 = vmatprep.subr.bf16.mxu0 0
        %610 = vmatpush2.bf16.msra.mxu0 %v570
        %611 = vmatprep.subr.bf16.mxu0 0
        %612 = vmatpush2.bf16.msra.mxu0 %v569
        %613 = vmatprep.subr.bf16.mxu0 0
        %614 = vmatpush2.bf16.msra.mxu0 %v568
        %615 = vmatprep.subr.bf16.mxu0 0
        %616 = vmatpush2.bf16.msra.mxu0 %v567
        %617 = vmatprep.subr.bf16.mxu0 0
        %618 = vmatpush2.bf16.msra.mxu0 %v566
        %619 = vmatprep.subr.bf16.mxu0 0
        %620 = vmatpush2.bf16.msra.mxu0 %v565
        %621 = vmatprep.mubr.bf16.mxu0 %v451
        %622 = vmatmul.mubr.bf16.gmra.mxu0 %v450
        %v623 = vpop.f32.mrf.mxu0
        %v624 = vadd.f32 %v491, %v623
        %v625 = vpop.f32.mrf.mxu0
        %v626 = vpop.f32.mrf.mxu0
        %v627 = vadd.f32 %v491, %v626
        %v628 = vpop.f32.mrf.mxu0
        %629 = vmatprep.mubr.bf16.mxu0 %v453
        %630 = vmatmul.mubr.bf16.gmra.mxu0 %v452
        %v631 = vpop.f32.mrf.mxu0
        %v632 = vadd.f32 %v491, %v631
        %v633 = vpop.f32.mrf.mxu0
        %v634 = vpop.f32.mrf.mxu0
        %v635 = vadd.f32 %v491, %v634
        %v636 = vpop.f32.mrf.mxu0
        %637 = vdwg.mxu0
        %638 = vst [vmem:[%s271] sm:$0xff] %v624
        %639 = vst [vmem:[%s271 + $0x8] sm:$0xff] %v627
        %640 = vst [vmem:[%s271 + $0x10] sm:$0xff] %v632
        %641 = vst [vmem:[%s271 + $0x18] sm:$0xff] %v635
        %s642 = sand.u32 %s141, 1
        %s643 = scalar_lea.sflag [#allocation4], %s642
        %s644 = sand.u32 %s141, 1
        %s645 = smul.addr %s644, 32
        %s646 = scalar_lea.vmem [#allocation8], %s645
        // Predicated region
        $region53: #{reconstruction_model_forward.1} parent=39 // pred_check
          %p647 = pneg %p151
        $region54: #{reconstruction_model_forward.1} parent=39 // pred_check_branch
          %649 = sbr.rel (%p647) target = $region56
        $region55: #{reconstruction_model_forward.1} parent=39 // pred_region
          %s650 = smul.u32 4, %s23
          %s652 = ssub.s32 512, 512
          %653 = vsyncadd %s643, %s652
          %s654 = smul.addr %s650, 128
          %s655 = scalar_lea.hbm %s5, %s654
          %s656 = sshll.u32 %s646, 4
          %s657 = int_to_ptr.vmem [resolvable:$true] %s656
          %662 = dma.vmem_to_hbm [thread:$0]  %s657, 512, %s655, %s643, 128, 128, 8
        $region56: #{reconstruction_model_forward.1} parent=39 // pred_fallthru
          _
      $region40: #{reconstruction_model_forward.1} parent=5 // pred_fallthru
        _
      %p663 = scmp.le.s32.totalorder 2, %s18
      // Predicated region
      $region57: #{reconstruction_model_forward.1} parent=5 // pred_check
        %p664 = pneg %p663
      $region58: #{reconstruction_model_forward.1} parent=5 // pred_check_branch
        %666 = sbr.rel (%p664) target = $region60
      $region59: #{reconstruction_model_forward.1} parent=5 // pred_region
        %s667 = ssub.s32 %s18, 2
        // Predicated region
        $region61: #{reconstruction_model_forward.1} parent=59 // pred_check
          %p668 = pneg %p157
        $region62: #{reconstruction_model_forward.1} parent=59 // pred_check_branch
          %670 = sbr.rel (%p668) target = $region64
        $region63: #{reconstruction_model_forward.1} parent=59 // pred_region
          %s671 = sand.u32 %s142, 1
          %s672 = scalar_lea.sflag [#allocation4], %s671
          %s673 = sand.u32 %s142, 1
          %s674 = smul.addr %s673, 32
          %s675 = scalar_lea.vmem [#allocation8], %s674
          %676 = dma.done %s672, 512
        $region64: #{reconstruction_model_forward.1} parent=59 // pred_fallthru
          _
      $region60: #{reconstruction_model_forward.1} parent=5 // pred_fallthru
        _
    $region6: #{reconstruction_model_forward.1} parent=1 // loop_footer
      %s22 = sadd.s32 1, %s18
    $region7: #{reconstruction_model_forward.1} parent=1 // loop_footer_branch
      %17 = sbr.rel target = $region3
    $region8: #{reconstruction_model_forward.1} parent=1 // loop_exit
      _
    %677 = vsyncpa [#allocation3], 1
    %s678 = scalar_lea.sflag [#allocation3], 1
    %679 = vsyncpa %s678, 1
    %680 = vsyncpa [#allocation6], 1
    %681 = vsyncpa [#allocation4], 1
    %s682 = scalar_lea.sflag [#allocation4], 1
    %683 = vsyncpa %s682, 1

</llo_original>
